<compile_context>
chip_gen: v6e
topology: v6e:2x2x1
jax: 0.10.0
libtpu: 0.0.40
codegen_flags: <defaults>
</compile_context>

<pallas_src>
import functools

import jax
import jax.numpy as jnp
from jax.experimental import pallas as pl
from jax.experimental.pallas import tpu as pltpu


def _tpu_generation_info():
    """Returns (num TensorCores sharing the grid, physical VMEM bytes/core)."""
    kind = ""
    try:
        kind = jax.devices()[0].device_kind.lower()
    except Exception:
        pass
    if "v7" in kind:
        return 2, 64 * 1024 * 1024            # v7x: 2 TC/chip, 64 MiB VMEM
    if "v6" in kind or "v5e" in kind or "lite" in kind:
        return 1, 128 * 1024 * 1024           # v5e / v6e: 1 TC, 128 MiB
    if "v5" in kind or "v4" in kind:
        return 2, 128 * 1024 * 1024           # v4 / v5p megacore
    if "v2" in kind or "v3" in kind:
        return 1, 16 * 1024 * 1024
    return 1, 64 * 1024 * 1024                # unknown: conservative


def _attn_kernel(text_ref, tproj_ref, w1a_t_ref, w2_row_ref, ctx_ref, attn_ref,
                 *, approx_recip):
    tb, s, h = text_ref.shape
    mm_dtype = w1a_t_ref.dtype

    text = text_ref[...]                                      # (TB,S,H) bf16|f32

    # linear1 restricted to the text half of the (never materialized) concat:
    # one big (TB*S, H) x (H, H) MXU matmul with f32 accumulation.
    h_text = jnp.dot(text.reshape(tb * s, h).astype(mm_dtype), w1a_t_ref[...],
                     preferred_element_type=jnp.float32)      # (TB*S, H)

    # topic @ W1b^T + b1 was hoisted to the wrapper (one XLA matmul); here we
    # only add the per-batch-row projection.
    hidden = jnp.tanh(h_text.reshape(tb, s, h)
                      + tproj_ref[...][:, None, :])           # (TB,S,H) f32

    # linear2 (N=1): VPU multiply + lane reduce against the (1,H) w2 row.  b2
    # is dropped (uniform shift under softmax -> no effect on attn/context).
    scores = jnp.sum(hidden * w2_row_ref[...], axis=-1)       # (TB,S) f32

    # softmax over the sequence axis (dim=1 of the module).
    m = jnp.max(scores, axis=-1, keepdims=True)
    e = jnp.exp(scores - m)
    denom = jnp.sum(e, axis=-1, keepdims=True)
    attn = e * pl.reciprocal(denom, approx=approx_recip)      # (TB,S)

    # context = sum_s attn * text as a batched (1,S)x(S,H) MXU contraction
    # (avoids the lane->sublane relayout + (TB,S,H) f32 temp of mul+sum).
    ctx = jnp.einsum("bqs,bsh->bqh", attn[:, None, :].astype(text.dtype), text,
                     preferred_element_type=jnp.float32)      # (TB,1,H)
    ctx_ref[...] = ctx.reshape(tb, h)
    attn_ref[...] = attn                                      # lane-dense (TB,S)


def self_attention_over_gru(text_hidden, topic_hidden, w1, b1, w2, b2,
                            *, matmul_dtype=jnp.bfloat16, target_rows=512):
    """
    text_hidden:  (B, S, H) float32
    topic_hidden: (B, H)    float32
    w1: (H, 2H), b1: (H,)   -- nn.Linear(hidden*2, hidden)
    w2: (1, H),  b2: (1,)   -- nn.Linear(hidden, 1)
    Returns (context (B, H), attn_weights (B, S, 1)).
    """
    B, S, H = text_hidden.shape
    fast = jnp.dtype(matmul_dtype) != jnp.dtype(jnp.float32)
    text_dtype = jnp.bfloat16 if fast else jnp.float32
    text_bytes = jnp.dtype(text_dtype).itemsize
    mm_bytes = jnp.dtype(matmul_dtype).itemsize

    num_cores, vmem_phys = _tpu_generation_info()
    vmem_cap = int(vmem_phys * 0.75)      # leave headroom for runtime scratch

    def footprint(tb):
        return (2 * tb * S * H * text_bytes            # text (double-buffered in)
                + 2 * tb * H * 4                       # topic projection (in)
                + 2 * H * H * mm_bytes + 2 * H * 4     # weights (worst-case 2-buf)
                + 2 * (tb * H * 4 + tb * S * 4)        # ctx / attn (out)
                + 3 * tb * S * H * 4                   # f32 temps (h_text/hidden/exp)
                + (2 << 20))                           # slack

    # Batch blocking: enough rows (tb*S) per block to feed the MXU and amortize
    # the ~0.35us/step pipeline overhead.  Only force >= num_cores grid blocks
    # on multi-TensorCore chips; on single-TC v5e/v6e maximize tb instead.
    tb = min(B, max(1, -(-target_rows // S)))
    if num_cores >= 2 and B >= 2:
        tb = min(tb, -(-B // num_cores))
    while tb > 1 and footprint(tb) > vmem_cap:
        tb = max(1, tb // 2)

    b_pad = -(-B // tb) * tb
    grid_b = b_pad // tb

    text_in = text_hidden.astype(text_dtype)
    topic_f32 = topic_hidden.astype(jnp.float32)
    if b_pad != B:
        text_in = jnp.pad(text_in, ((0, b_pad - B), (0, 0), (0, 0)))
        topic_f32 = jnp.pad(topic_f32, ((0, b_pad - B), (0, 0)))

    # linear1's weight split along its input dim: W1 = [W1a | W1b].  The topic
    # half (+ b1) is hoisted to one accurate XLA matmul here (JAX glue).
    w1 = w1.astype(jnp.float32)
    w1a_t = jnp.transpose(w1[:, :H]).astype(matmul_dtype)        # (H,H) acts on text
    tproj = jnp.einsum("bh,oh->bo", topic_f32, w1[:, H:],
                       precision=jax.lax.Precision.HIGHEST) \
            + b1.astype(jnp.float32)                             # (b_pad,H) f32
    w2_row = w2.reshape(1, H).astype(jnp.float32)                # lane-dense row
    del b2   # softmax shift-invariance: no effect on attn_weights or context

    def _call(single_buffer_weights):
        def const_spec(shape):
            kwargs = {}
            if single_buffer_weights:
                # Grid-invariant operand: single buffer, no per-step re-DMA.
                kwargs["pipeline_mode"] = pl.Buffered(1)
            return pl.BlockSpec(shape, lambda b: (0,) * len(shape), **kwargs)

        grid_spec = pltpu.PrefetchScalarGridSpec(
            num_scalar_prefetch=0,
            grid=(grid_b,),
            in_specs=[
                pl.BlockSpec((tb, S, H), lambda b: (b, 0, 0)),   # text_hidden
                pl.BlockSpec((tb, H), lambda b: (b, 0)),         # topic proj + b1
                const_spec((H, H)),                               # w1a_t
                const_spec((1, H)),                               # w2 row
            ],
            out_specs=[
                pl.BlockSpec((tb, H), lambda b: (b, 0)),         # context
                pl.BlockSpec((tb, S), lambda b: (b, 0)),         # attn (lane-dense)
            ],
        )
        return pl.pallas_call(
            functools.partial(_attn_kernel, approx_recip=fast),
            out_shape=(
                jax.ShapeDtypeStruct((b_pad, H), jnp.float32),
                jax.ShapeDtypeStruct((b_pad, S), jnp.float32),
            ),
            grid_spec=grid_spec,
            compiler_params=pltpu.CompilerParams(
                dimension_semantics=("parallel",),
                vmem_limit_bytes=vmem_cap,
            ),
        )(text_in, tproj, w1a_t, w2_row)

    try:
        ctx, attn2d = _call(True)
    except Exception:
        # Some JAX versions reject pipeline_mode on the main pallas_call path;
        # fall back to default double-buffered constant operands.
        ctx, attn2d = _call(False)

    return ctx[:B], attn2d[:B, :, None]   # restore the module's (B,S,1) layout


def _reference(text_hidden, topic_hidden, w1, b1, w2, b2):
    B, S, H = text_hidden.shape
    topic_exp = jnp.broadcast_to(topic_hidden[:, None, :], (B, S, H))
    combined = jnp.concatenate([text_hidden, topic_exp], axis=2)   # (B,S,2H)
    h = jnp.tanh(combined @ w1.T + b1)
    scores = h @ w2.T + b2                                         # (B,S,1)
    attn = jax.nn.softmax(scores, axis=1)
    ctx = jnp.sum(attn * text_hidden, axis=1)
    return ctx, attn


if __name__ == "__main__":
    B, S, H = 2, 8, 32

    key = jax.random.PRNGKey(0)
    k_text, k_topic, k_w1, k_b1, k_w2, k_b2 = jax.random.split(key, 6)

    text_hidden = jax.random.normal(k_text, (B, S, H), dtype=jnp.float32)
    topic_hidden = jax.random.normal(k_topic, (B, H), dtype=jnp.float32)

    # Deterministic parameter init (shapes from nn.Linear in __init__).
    w1 = jax.random.normal(k_w1, (H, 2 * H), dtype=jnp.float32) * 0.1
    b1 = jax.random.normal(k_b1, (H,), dtype=jnp.float32) * 0.1
    w2 = jax.random.normal(k_w2, (1, H), dtype=jnp.float32) * 0.1
    b2 = jax.random.normal(k_b2, (1,), dtype=jnp.float32) * 0.1

    ctx_ref, attn_ref = _reference(text_hidden, topic_hidden, w1, b1, w2, b2)

    # 1) Exact-precision path (f32 streams + f32 matmuls) — tight tolerance.
    ctx32, attn32 = self_attention_over_gru(
        text_hidden, topic_hidden, w1, b1, w2, b2, matmul_dtype=jnp.float32)
    jax.block_until_ready((ctx32, attn32))
    assert ctx32.shape == (B, H) and attn32.shape == (B, S, 1)
    assert jnp.allclose(ctx32, ctx_ref, atol=1e-5, rtol=1e-5)
    assert jnp.allclose(attn32, attn_ref, atol=1e-5, rtol=1e-5)

    # 2) Fast path (bf16 text stream + bf16 matmuls, f32 accumulation).
    ctx16, attn16 = self_attention_over_gru(
        text_hidden, topic_hidden, w1, b1, w2, b2, matmul_dtype=jnp.bfloat16)
    jax.block_until_ready((ctx16, attn16))
    assert ctx16.shape == (B, H) and attn16.shape == (B, S, 1)
    assert jnp.allclose(ctx16, ctx_ref, atol=2e-2, rtol=2e-2)
    assert jnp.allclose(attn16, attn_ref, atol=2e-2, rtol=2e-2)

    print("KERNEL_OK")
</pallas_src>

<mosaic_0001>
module attributes {stable_mosaic.version = 11 : i64} {
  func.func @_attn_kernel(%arg0: i32, %arg1: memref<2x8x32xf32, #tpu.memory_space<vmem>>, %arg2: memref<2x32xf32, #tpu.memory_space<vmem>>, %arg3: memref<32x32xf32, #tpu.memory_space<vmem>>, %arg4: memref<1x32xf32, #tpu.memory_space<vmem>>, %arg5: memref<2x32xf32, #tpu.memory_space<vmem>>, %arg6: memref<2x8xf32, #tpu.memory_space<vmem>>) attributes {dimension_semantics = [#tpu.dimension_semantics<parallel>], iteration_bounds = array<i64: 1>, scalar_prefetch = 0 : i64, scratch_operands = 0 : i64, tpu.core_type = #tpu.core_type<tc>, window_params = [{transform_indices = @transform_0, window_bounds = array<i64: 2, 8, 32>}, {transform_indices = @transform_1, window_bounds = array<i64: 2, 32>}, {pipeline_mode = #tpu.pipeline_mode<synchronous>, transform_indices = @transform_2, window_bounds = array<i64: 32, 32>}, {pipeline_mode = #tpu.pipeline_mode<synchronous>, transform_indices = @transform_3, window_bounds = array<i64: 1, 32>}, {transform_indices = @transform_4, window_bounds = array<i64: 2, 32>}, {transform_indices = @transform_5, window_bounds = array<i64: 2, 8>}]} {
    %c0 = arith.constant 0 : index
    %c0_0 = arith.constant 0 : index
    %c0_1 = arith.constant 0 : index
    %0 = vector.load %arg1[%c0, %c0_0, %c0_1] : memref<2x8x32xf32, #tpu.memory_space<vmem>>, vector<2x8x32xf32>
    %1 = vector.shape_cast %0 : vector<2x8x32xf32> to vector<16x32xf32>
    %c0_2 = arith.constant 0 : index
    %c0_3 = arith.constant 0 : index
    %2 = vector.load %arg3[%c0_2, %c0_3] : memref<32x32xf32, #tpu.memory_space<vmem>>, vector<32x32xf32>
    %cst = arith.constant dense<0.000000e+00> : vector<16x32xf32>
    %3 = tpu.matmul %1, %2, %cst {dimension_numbers = #tpu.dot_dimension_numbers<[1], [0], [0], [1], [0, 0, 1, 1], [], []>} : vector<16x32xf32>, vector<32x32xf32>, vector<16x32xf32> -> vector<16x32xf32>
    %4 = vector.shape_cast %3 : vector<16x32xf32> to vector<2x8x32xf32>
    %c0_4 = arith.constant 0 : index
    %c0_5 = arith.constant 0 : index
    %5 = vector.load %arg2[%c0_4, %c0_5] : memref<2x32xf32, #tpu.memory_space<vmem>>, vector<2x32xf32>
    %6 = vector.shape_cast %5 : vector<2x32xf32> to vector<2x1x32xf32>
    %7 = vector.broadcast %6 : vector<2x1x32xf32> to vector<2x8x32xf32>
    %8 = arith.addf %4, %7 : vector<2x8x32xf32>
    %9 = math.tanh %8 : vector<2x8x32xf32>
    %c0_6 = arith.constant 0 : index
    %c0_7 = arith.constant 0 : index
    %10 = vector.load %arg4[%c0_6, %c0_7] : memref<1x32xf32, #tpu.memory_space<vmem>>, vector<1x32xf32>
    %11 = vector.shape_cast %10 : vector<1x32xf32> to vector<1x1x32xf32>
    %12 = vector.broadcast %11 : vector<1x1x32xf32> to vector<2x8x32xf32>
    %13 = arith.mulf %9, %12 : vector<2x8x32xf32>
    %cst_8 = arith.constant dense<0.000000e+00> : vector<2x8xf32>
    %14 = vector.multi_reduction <add>, %13, %cst_8 [2] : vector<2x8x32xf32> to vector<2x8xf32>
    %cst_9 = arith.constant dense<0xFF800000> : vector<2xf32>
    %15 = vector.multi_reduction <maximumf>, %14, %cst_9 [1] : vector<2x8xf32> to vector<2xf32>
    %16 = vector.shape_cast %15 : vector<2xf32> to vector<2x1xf32>
    %17 = vector.broadcast %16 : vector<2x1xf32> to vector<2x8xf32>
    %18 = arith.subf %14, %17 : vector<2x8xf32>
    %19 = math.exp %18 : vector<2x8xf32>
    %cst_10 = arith.constant dense<0.000000e+00> : vector<2xf32>
    %20 = vector.multi_reduction <add>, %19, %cst_10 [1] : vector<2x8xf32> to vector<2xf32>
    %21 = vector.shape_cast %20 : vector<2xf32> to vector<2x1xf32>
    %22 = tpu.reciprocal %21 : vector<2x1xf32> -> vector<2x1xf32>
    %23 = vector.broadcast %22 : vector<2x1xf32> to vector<2x8xf32>
    %24 = arith.mulf %19, %23 : vector<2x8xf32>
    %25 = vector.shape_cast %24 : vector<2x8xf32> to vector<2x1x8xf32>
    "tpu.trace_start"() <{level = 10 : i32, message = "bqs,bsh->bqh"}> : () -> ()
    %cst_11 = arith.constant dense<0.000000e+00> : vector<2x1x32xf32>
    %26 = tpu.matmul %25, %0, %cst_11 {dimension_numbers = #tpu.dot_dimension_numbers<[2], [1], [1], [2], [0, 0, 0, 1, 1, 2], [0], [0]>} : vector<2x1x8xf32>, vector<2x8x32xf32>, vector<2x1x32xf32> -> vector<2x1x32xf32>
    "tpu.trace_stop"() : () -> ()
    %27 = vector.shape_cast %26 : vector<2x1x32xf32> to vector<2x32xf32>
    %c0_12 = arith.constant 0 : index
    %c0_13 = arith.constant 0 : index
    %28 = vector.load %arg5[%c0_12, %c0_13] : memref<2x32xf32, #tpu.memory_space<vmem>>, vector<2x32xf32>
    tpu.vector_store %arg5[%c0_12, %c0_13], %27 {strides = array<i32>} : memref<2x32xf32, #tpu.memory_space<vmem>>, vector<2x32xf32>,
    %c0_14 = arith.constant 0 : index
    %c0_15 = arith.constant 0 : index
    %29 = vector.load %arg6[%c0_14, %c0_15] : memref<2x8xf32, #tpu.memory_space<vmem>>, vector<2x8xf32>
    tpu.vector_store %arg6[%c0_14, %c0_15], %24 {strides = array<i32>} : memref<2x8xf32, #tpu.memory_space<vmem>>, vector<2x8xf32>,
    return
  }
  func.func @transform_0(%arg0: i32) -> (i32, i32, i32) {
    %c0_i32 = arith.constant 0 : i32
    %c0_i32_0 = arith.constant 0 : i32
    %c0_i32_1 = arith.constant 0 : i32
    return %arg0, %c0_i32, %c0_i32_0 : i32, i32, i32
  }
  func.func @transform_1(%arg0: i32) -> (i32, i32) {
    %c0_i32 = arith.constant 0 : i32
    %c0_i32_0 = arith.constant 0 : i32
    return %arg0, %c0_i32 : i32, i32
  }
  func.func @transform_2(%arg0: i32) -> (i32, i32) {
    %c0_i32 = arith.constant 0 : i32
    %c0_i32_0 = arith.constant 0 : i32
    %c0_i32_1 = arith.constant 0 : i32
    return %c0_i32, %c0_i32_0 : i32, i32
  }
  func.func @transform_3(%arg0: i32) -> (i32, i32) {
    %c0_i32 = arith.constant 0 : i32
    %c0_i32_0 = arith.constant 0 : i32
    %c0_i32_1 = arith.constant 0 : i32
    return %c0_i32, %c0_i32_0 : i32, i32
  }
  func.func @transform_4(%arg0: i32) -> (i32, i32) {
    %c0_i32 = arith.constant 0 : i32
    %c0_i32_0 = arith.constant 0 : i32
    return %arg0, %c0_i32 : i32, i32
  }
  func.func @transform_5(%arg0: i32) -> (i32, i32) {
    %c0_i32 = arith.constant 0 : i32
    %c0_i32_0 = arith.constant 0 : i32
    return %arg0, %c0_i32 : i32, i32
  }
}

module attributes {stable_mosaic.version = 11 : i64} {
  func.func @_attn_kernel(%arg0: i32, %arg1: memref<2x8x32xf32, #tpu.memory_space<vmem>>, %arg2: memref<2x32xf32, #tpu.memory_space<vmem>>, %arg3: memref<32x32xf32, #tpu.memory_space<vmem>>, %arg4: memref<1x32xf32, #tpu.memory_space<vmem>>, %arg5: memref<2x32xf32, #tpu.memory_space<vmem>>, %arg6: memref<2x8xf32, #tpu.memory_space<vmem>>) attributes {dimension_semantics = [#tpu.dimension_semantics<parallel>], iteration_bounds = array<i64: 1>, scalar_prefetch = 0 : i64, scratch_operands = 0 : i64, tpu.core_type = #tpu.core_type<tc>, window_params = [{transform_indices = @transform_0, window_bounds = array<i64: 2, 8, 32>}, {transform_indices = @transform_1, window_bounds = array<i64: 2, 32>}, {pipeline_mode = #tpu.pipeline_mode<synchronous>, transform_indices = @transform_2, window_bounds = array<i64: 32, 32>}, {pipeline_mode = #tpu.pipeline_mode<synchronous>, transform_indices = @transform_3, window_bounds = array<i64: 1, 32>}, {transform_indices = @transform_4, window_bounds = array<i64: 2, 32>}, {transform_indices = @transform_5, window_bounds = array<i64: 2, 8>}]} {
    %c0 = arith.constant 0 : index
    %c0_0 = arith.constant 0 : index
    %c0_1 = arith.constant 0 : index
    %0 = vector.load %arg1[%c0, %c0_0, %c0_1] : memref<2x8x32xf32, #tpu.memory_space<vmem>>, vector<2x8x32xf32>
    %1 = vector.shape_cast %0 : vector<2x8x32xf32> to vector<16x32xf32>
    %c0_2 = arith.constant 0 : index
    %c0_3 = arith.constant 0 : index
    %2 = vector.load %arg3[%c0_2, %c0_3] : memref<32x32xf32, #tpu.memory_space<vmem>>, vector<32x32xf32>
    %cst = arith.constant dense<0.000000e+00> : vector<16x32xf32>
    %3 = tpu.matmul %1, %2, %cst {dimension_numbers = #tpu.dot_dimension_numbers<[1], [0], [0], [1], [0, 0, 1, 1], [], []>} : vector<16x32xf32>, vector<32x32xf32>, vector<16x32xf32> -> vector<16x32xf32>
    %4 = vector.shape_cast %3 : vector<16x32xf32> to vector<2x8x32xf32>
    %c0_4 = arith.constant 0 : index
    %c0_5 = arith.constant 0 : index
    %5 = vector.load %arg2[%c0_4, %c0_5] : memref<2x32xf32, #tpu.memory_space<vmem>>, vector<2x32xf32>
    %6 = vector.shape_cast %5 : vector<2x32xf32> to vector<2x1x32xf32>
    %7 = vector.broadcast %6 : vector<2x1x32xf32> to vector<2x8x32xf32>
    %8 = arith.addf %4, %7 : vector<2x8x32xf32>
    %9 = math.tanh %8 : vector<2x8x32xf32>
    %c0_6 = arith.constant 0 : index
    %c0_7 = arith.constant 0 : index
    %10 = vector.load %arg4[%c0_6, %c0_7] : memref<1x32xf32, #tpu.memory_space<vmem>>, vector<1x32xf32>
    %11 = vector.shape_cast %10 : vector<1x32xf32> to vector<1x1x32xf32>
    %12 = vector.broadcast %11 : vector<1x1x32xf32> to vector<2x8x32xf32>
    %13 = arith.mulf %9, %12 : vector<2x8x32xf32>
    %cst_8 = arith.constant dense<0.000000e+00> : vector<2x8xf32>
    %14 = vector.multi_reduction <add>, %13, %cst_8 [2] : vector<2x8x32xf32> to vector<2x8xf32>
    %cst_9 = arith.constant dense<0xFF800000> : vector<2xf32>
    %15 = vector.multi_reduction <maximumf>, %14, %cst_9 [1] : vector<2x8xf32> to vector<2xf32>
    %16 = vector.shape_cast %15 : vector<2xf32> to vector<2x1xf32>
    %17 = vector.broadcast %16 : vector<2x1xf32> to vector<2x8xf32>
    %18 = arith.subf %14, %17 : vector<2x8xf32>
    %19 = math.exp %18 : vector<2x8xf32>
    %cst_10 = arith.constant dense<0.000000e+00> : vector<2xf32>
    %20 = vector.multi_reduction <add>, %19, %cst_10 [1] : vector<2x8xf32> to vector<2xf32>
    %21 = vector.shape_cast %20 : vector<2xf32> to vector<2x1xf32>
    %22 = tpu.reciprocal %21 : vector<2x1xf32> -> vector<2x1xf32>
    %23 = vector.broadcast %22 : vector<2x1xf32> to vector<2x8xf32>
    %24 = arith.mulf %19, %23 : vector<2x8xf32>
    %25 = vector.shape_cast %24 : vector<2x8xf32> to vector<2x1x8xf32>
    "tpu.trace_start"() <{level = 10 : i32, message = "bqs,bsh->bqh"}> : () -> ()
    %cst_11 = arith.constant dense<0.000000e+00> : vector<2x1x32xf32>
    %26 = tpu.matmul %25, %0, %cst_11 {dimension_numbers = #tpu.dot_dimension_numbers<[2], [1], [1], [2], [0, 0, 0, 1, 1, 2], [0], [0]>} : vector<2x1x8xf32>, vector<2x8x32xf32>, vector<2x1x32xf32> -> vector<2x1x32xf32>
    "tpu.trace_stop"() : () -> ()
    %27 = vector.shape_cast %26 : vector<2x1x32xf32> to vector<2x32xf32>
    %c0_12 = arith.constant 0 : index
    %c0_13 = arith.constant 0 : index
    %28 = vector.load %arg5[%c0_12, %c0_13] : memref<2x32xf32, #tpu.memory_space<vmem>>, vector<2x32xf32>
    tpu.vector_store %arg5[%c0_12, %c0_13], %27 {strides = array<i32>} : memref<2x32xf32, #tpu.memory_space<vmem>>, vector<2x32xf32>,
    %c0_14 = arith.constant 0 : index
    %c0_15 = arith.constant 0 : index
    %29 = vector.load %arg6[%c0_14, %c0_15] : memref<2x8xf32, #tpu.memory_space<vmem>>, vector<2x8xf32>
    tpu.vector_store %arg6[%c0_14, %c0_15], %24 {strides = array<i32>} : memref<2x8xf32, #tpu.memory_space<vmem>>, vector<2x8xf32>,
    return
  }
  func.func @transform_0(%arg0: i32) -> (i32, i32, i32) {
    %c0_i32 = arith.constant 0 : i32
    %c0_i32_0 = arith.constant 0 : i32
    %c0_i32_1 = arith.constant 0 : i32
    return %arg0, %c0_i32, %c0_i32_0 : i32, i32, i32
  }
  func.func @transform_1(%arg0: i32) -> (i32, i32) {
    %c0_i32 = arith.constant 0 : i32
    %c0_i32_0 = arith.constant 0 : i32
    return %arg0, %c0_i32 : i32, i32
  }
  func.func @transform_2(%arg0: i32) -> (i32, i32) {
    %c0_i32 = arith.constant 0 : i32
    %c0_i32_0 = arith.constant 0 : i32
    %c0_i32_1 = arith.constant 0 : i32
    return %c0_i32, %c0_i32_0 : i32, i32
  }
  func.func @transform_3(%arg0: i32) -> (i32, i32) {
    %c0_i32 = arith.constant 0 : i32
    %c0_i32_0 = arith.constant 0 : i32
    %c0_i32_1 = arith.constant 0 : i32
    return %c0_i32, %c0_i32_0 : i32, i32
  }
  func.func @transform_4(%arg0: i32) -> (i32, i32) {
    %c0_i32 = arith.constant 0 : i32
    %c0_i32_0 = arith.constant 0 : i32
    return %arg0, %c0_i32 : i32, i32
  }
  func.func @transform_5(%arg0: i32) -> (i32, i32) {
    %c0_i32 = arith.constant 0 : i32
    %c0_i32_0 = arith.constant 0 : i32
    return %arg0, %c0_i32 : i32, i32
  }
}

</mosaic_0001>

<llo_original>
// kernel: tpu_custom_call.1
$region0: #{tpu_custom_call.1}
  #allocation0 [shape = 'u32[]', space=smem, size = 0x4, offset = 0x4, fixed_abs, tag = 'smem constant byte address 0x4 - core index']
  #allocation1 [shape = 'u32[144,128]{1,0:T(1,128)}', space=vmem, size = 0x12000, scoped, tag = 'internal scratch']
  %s0 = inlined_call_operand.hbm [shape: f32[2,8,32], index: 0, kind: input, shape index: {}]
  %s1 = inlined_call_operand.hbm [shape: f32[2,32], index: 1, kind: input, shape index: {}]
  %s2 = inlined_call_operand.hbm [shape: f32[32,32], index: 2, kind: input, shape index: {}]
  %s3 = inlined_call_operand.vmem [shape: f32[1,32], index: 3, kind: input, shape index: {}]
  %s4 = inlined_call_operand.hbm [shape: f32[2,32], index: 4, kind: output, shape index: {0}]
  %s5 = inlined_call_operand.hbm [shape: f32[2,8], index: 5, kind: output, shape index: {1}]
  %6 = xla_tuple %s4, %s5
  %s7 = sld [smem:[#allocation0]]
  $region46: #{tpu_custom_call.1} parent=0
    _
  %s9 = ssub.s32 1, %s7
  %s10 = scalar_select 0, %s9, %s7
  $region1: #{tpu_custom_call.1} parent=0
    #allocation2 [shape = 'u8[8192]{0}', space=vmem, size = 0x2000, scoped, tag = 'input window, operand 0, single buffered']
    #allocation3 [shape = 's32[1]{0}', space=sflag, size = 0x4, scoped, tag = 'scoped memory for tpu_custom_call.1']
    #allocation4 [shape = 's32[1]{0}', space=sflag, size = 0x4, scoped, tag = 'scoped memory for tpu_custom_call.1']
    #allocation5 [shape = 'u8[1024]{0}', space=vmem, size = 0x400, scoped, tag = 'input window, operand 1, single buffered']
    #allocation6 [shape = 's32[1]{0}', space=sflag, size = 0x4, scoped, tag = 'scoped memory for tpu_custom_call.1']
    #allocation7 [shape = 'u8[16384]{0}', space=vmem, size = 0x4000, scoped, tag = 'input window, operand 2, single buffered']
    #allocation8 [shape = 'u8[1024]{0}', space=vmem, size = 0x400, scoped, tag = 'output window, operand 0, single buffered']
    #allocation9 [shape = 'u8[1024]{0}', space=vmem, size = 0x400, scoped, tag = 'output window, operand 1, single buffered']
    #allocation10 [shape = 's32[1]{0}', space=sflag, size = 0x4, scoped, tag = 'scoped memory for tpu_custom_call.1']
    %11 = vsyncpa [#allocation3], 0
    %12 = vsyncpa [#allocation6], 0
    %13 = vsyncpa [#allocation4], 0
    %14 = vsyncpa [#allocation10], 0
    // Predicated region
    $region2: #{tpu_custom_call.1} parent=1 // pred_check
      _
    $region3: #{tpu_custom_call.1} parent=1 // pred_check_branch
      %16 = sbr.rel (0) target = $region5
    $region4: #{tpu_custom_call.1} parent=1 // pred_region
      %s18 = ssub.s32 256, 256
      %19 = vsyncadd [#allocation3], %s18
      %s20 = sshll.u32 [#allocation2], 4
      %s21 = int_to_ptr.vmem [resolvable:$true] %s20
      %26 = dma.hbm_to_vmem [thread:$0]  %s0, 256, %s21, [#allocation3], 128, 128, 8
    $region5: #{tpu_custom_call.1} parent=1 // pred_fallthru
      _
    // Predicated region
    $region6: #{tpu_custom_call.1} parent=1 // pred_check
      _
    $region7: #{tpu_custom_call.1} parent=1 // pred_check_branch
      %28 = sbr.rel (0) target = $region9
    $region8: #{tpu_custom_call.1} parent=1 // pred_region
      %s30 = ssub.s32 32, 32
      %31 = vsyncadd [#allocation6], %s30
      %s33 = sshll.u32 [#allocation5], 4
      %s34 = int_to_ptr.vmem [resolvable:$true] %s33
      %36 = dma.hbm_to_vmem [thread:$0]  %s1, 32, %s34, [#allocation6]
    $region9: #{tpu_custom_call.1} parent=1 // pred_fallthru
      _
    // Predicated region
    $region10: #{tpu_custom_call.1} parent=1 // pred_check
      _
    $region11: #{tpu_custom_call.1} parent=1 // pred_check_branch
      %38 = sbr.rel (0) target = $region13
    $region12: #{tpu_custom_call.1} parent=1 // pred_region
      %s40 = ssub.s32 512, 512
      %41 = vsyncadd [#allocation6], %s40
      %s42 = sshll.u32 [#allocation7], 4
      %s43 = int_to_ptr.vmem [resolvable:$true] %s42
      %48 = dma.hbm_to_vmem [thread:$0]  %s2, 512, %s43, [#allocation6], 128, 128, 8
    $region13: #{tpu_custom_call.1} parent=1 // pred_fallthru
      _
    // Predicated region
    $region14: #{tpu_custom_call.1} parent=1 // pred_check
      _
    $region15: #{tpu_custom_call.1} parent=1 // pred_check_branch
      %50 = sbr.rel (0) target = $region17
    $region16: #{tpu_custom_call.1} parent=1 // pred_region
      _
    $region17: #{tpu_custom_call.1} parent=1 // pred_fallthru
      _
    // Predicated region
    $region18: #{tpu_custom_call.1} parent=1 // pred_check
      _
    $region19: #{tpu_custom_call.1} parent=1 // pred_check_branch
      %52 = sbr.rel (0) target = $region21
    $region20: #{tpu_custom_call.1} parent=1 // pred_region
      %53 = dma.done [#allocation3], 256
    $region21: #{tpu_custom_call.1} parent=1 // pred_fallthru
      _
    // Predicated region
    $region22: #{tpu_custom_call.1} parent=1 // pred_check
      _
    $region23: #{tpu_custom_call.1} parent=1 // pred_check_branch
      %55 = sbr.rel (0) target = $region25
    $region24: #{tpu_custom_call.1} parent=1 // pred_region
      %56 = dma.done [#allocation6], 32
    $region25: #{tpu_custom_call.1} parent=1 // pred_fallthru
      _
    // Predicated region
    $region26: #{tpu_custom_call.1} parent=1 // pred_check
      _
    $region27: #{tpu_custom_call.1} parent=1 // pred_check_branch
      %58 = sbr.rel (0) target = $region29
    $region28: #{tpu_custom_call.1} parent=1 // pred_region
      %59 = dma.done [#allocation6], 512
    $region29: #{tpu_custom_call.1} parent=1 // pred_fallthru
      _
    %v60 = vld [vmem:[#allocation2] sm:$0xff]
    %v61 = vld [vmem:[#allocation2 + $0x8] sm:$0xff]
    %v62 = vld [vmem:[#allocation7] sm:$0xff]
    %v63 = vld [vmem:[#allocation7 + $0x8] sm:$0xff]
    %v64 = vld [vmem:[#allocation7 + $0x10] sm:$0xff]
    %v65 = vld [vmem:[#allocation7 + $0x18] sm:$0xff]
    %vm66 = vcmask 261120
    %v68 = vsel %vm66, %v60, 0
    %v71 = vsel %vm66, %v61, 0
    %73 = vmatprep.subr.mxu0 0.0
    %74 = vmatpush1.msra.mxu0 0.0
    %75 = vmatprep.subr.mxu0 0.0
    %76 = vmatpush1.msra.mxu0 0.0
    %77 = vmatprep.subr.mxu0 0.0
    %78 = vmatpush1.msra.mxu0 0.0
    %79 = vmatprep.subr.mxu0 0.0
    %80 = vmatpush1.msra.mxu0 0.0
    %81 = vmatprep.subr.mxu0 0.0
    %82 = vmatpush1.msra.mxu0 0.0
    %83 = vmatprep.subr.mxu0 0.0
    %84 = vmatpush1.msra.mxu0 0.0
    %85 = vmatprep.subr.mxu0 0.0
    %86 = vmatpush1.msra.mxu0 0.0
    %87 = vmatprep.subr.mxu0 0.0
    %88 = vmatpush1.msra.mxu0 0.0
    %89 = vmatprep.subr.mxu0 0.0
    %90 = vmatpush1.msra.mxu0 0.0
    %91 = vmatprep.subr.mxu0 0.0
    %92 = vmatpush1.msra.mxu0 0.0
    %93 = vmatprep.subr.mxu0 0.0
    %94 = vmatpush1.msra.mxu0 0.0
    %95 = vmatprep.subr.mxu0 0.0
    %96 = vmatpush1.msra.mxu0 0.0
    %97 = vmatprep.subr.mxu0 0.0
    %98 = vmatpush1.msra.mxu0 %v65
    %99 = vmatprep.subr.mxu0 0.0
    %100 = vmatpush1.msra.mxu0 %v64
    %101 = vmatprep.subr.mxu0 0.0
    %102 = vmatpush1.msra.mxu0 %v63
    %103 = vmatprep.subr.mxu0 0.0
    %104 = vmatpush1.msra.mxu0 %v62
    %105 = vmatprep.subr.mxu0 0.0
    %106 = vmatpush2.msra.mxu0 0.0
    %107 = vmatprep.subr.mxu0 0.0
    %108 = vmatpush2.msra.mxu0 0.0
    %109 = vmatprep.subr.mxu0 0.0
    %110 = vmatpush2.msra.mxu0 0.0
    %111 = vmatprep.subr.mxu0 0.0
    %112 = vmatpush2.msra.mxu0 0.0
    %113 = vmatprep.subr.mxu0 0.0
    %114 = vmatpush2.msra.mxu0 0.0
    %115 = vmatprep.subr.mxu0 0.0
    %116 = vmatpush2.msra.mxu0 0.0
    %117 = vmatprep.subr.mxu0 0.0
    %118 = vmatpush2.msra.mxu0 0.0
    %119 = vmatprep.subr.mxu0 0.0
    %120 = vmatpush2.msra.mxu0 0.0
    %121 = vmatprep.subr.mxu0 0.0
    %122 = vmatpush2.msra.mxu0 0.0
    %123 = vmatprep.subr.mxu0 0.0
    %124 = vmatpush2.msra.mxu0 0.0
    %125 = vmatprep.subr.mxu0 0.0
    %126 = vmatpush2.msra.mxu0 0.0
    %127 = vmatprep.subr.mxu0 0.0
    %128 = vmatpush2.msra.mxu0 0.0
    %129 = vmatprep.subr.mxu0 0.0
    %130 = vmatpush2.msra.mxu0 0.0
    %131 = vmatprep.subr.mxu0 0.0
    %132 = vmatpush2.msra.mxu0 0.0
    %133 = vmatprep.subr.mxu0 0.0
    %134 = vmatpush2.msra.mxu0 0.0
    %135 = vmatprep.subr.mxu0 0.0
    %136 = vmatpush2.msra.mxu0 0.0
    %137 = vmatprep.mubr.f32.mxu0 0.0
    %138 = vmatmul.mubr.f32.gmra.mxu0 %v68
    %v139 = vpop.f32.mrf.mxu0
    %v140 = vadd.f32 0.0, %v139
    %v141 = vpop.f32.mrf.mxu0
    %142 = vmatprep.mubr.f32.mxu0 0.0
    %143 = vmatmul.mubr.f32.gmra.mxu0 %v71
    %v144 = vpop.f32.mrf.mxu0
    %v145 = vadd.f32 0.0, %v144
    %v146 = vpop.f32.mrf.mxu0
    %147 = vdwg.mxu0
    %v148 = vld [vmem:[#allocation5] sm:$0x3]
    %v151 = vunpack.c.l.s4 1966171168
    %v152 = vunpack.c.0.s8 %v151
    %v153 = vlaneseq
    %v154 = vshrl.u32 %v153, 7
    %v155 = vsub.s32 %v152, %v154
    %v156 = vrot.slane %v148, %v155
    %v157 = vcombine.high %v156, %v156
    %v159 = vunpack.c.l.s4 1966171168
    %v160 = vunpack.c.0.s8 %v159
    %v161 = vlaneseq
    %v162 = vshrl.u32 %v161, 7
    %v163 = vsub.s32 %v160, %v162
    %v164 = vrot.slane %v156, %v163
    %v166 = vunpack.c.l.s4 1966171168
    %v167 = vunpack.c.0.s8 %v166
    %v168 = vlaneseq
    %v169 = vshrl.u32 %v168, 7
    %v170 = vsub.s32 %v167, %v169
    %v171 = vrot.slane %v157, %v170
    %v172 = vlaneseq
    %v173 = vshrl.u32 %v172, 7
    %v174 = vsub.s32 0, %v173
    %v175 = vrot.slane %v164, %v174
    %v176 = vlaneseq
    %v177 = vshrl.u32 %v176, 7
    %v178 = vsub.s32 0, %v177
    %v179 = vrot.slane %v171, %v178
    %v182 = vadd.f32 %v140, %v175
    %v183 = vadd.f32 %v145, %v179
    %v184 = vtanh.pop %v182
    %v185 = vtanh.pop %v183
    %v186 = vld [vmem:[%s3] sm:$0x1]
    %v188 = vlaneseq
    %v189 = vshrl.u32 %v188, 7
    %v190 = vsub.s32 0, %v189
    %v191 = vrot.slane %v186, %v190
    %v193 = vmul.f32 %v184, %v191
    %v194 = vmul.f32 %v185, %v191
    %v195 = vsel %vm66, %v193, 0.0
    %196 = vadd.xlane.f32.xlu0 %v195
    %v197 = vpop.xlane.xlu0 %196
    %v198 = vsel %vm66, %v194, 0.0
    %199 = vadd.xlane.f32.xlu0 %v198
    %v200 = vpop.xlane.xlu0 %199
    %v203 = vlaneseq
    %v204 = vand.u32 %v203, 127
    %v205 = vlaneseq
    %v206 = vshrl.u32 %v205, 7
    %v207 = vsub.s32 %v204, %v206
    %v208 = vrot.slane %v197, %v207
    %v209 = vlaneseq
    %v210 = vshrl.u32 %v209, 7
    %v211 = vsub.s32 %v204, %v210
    %v212 = vrot.slane %v200, %v211
    %vm213 = vcmask 1041409
    %v214 = vsel %vm213, %v212, %v208
    %vm216 = vcmask 58368
    %v217 = vsel %vm216, %v214, -inf
    %218 = vmax.xlane.f32.xlu0 %v217
    %v219 = vpop.xlane.xlu0 %218
    %v221 = vlaneseq
    %v222 = vshrl.u32 %v221, 7
    %v223 = vsub.s32 0, %v222
    %v224 = vrot.slane %v219, %v223
    %v225 = vlaneseq
    %v226 = vshrl.u32 %v225, 7
    %v227 = vsub.s32 1, %v226
    %v228 = vrot.slane %v219, %v227
    %v231 = vsub.f32 %v197, %v224
    %v232 = vsub.f32 %v200, %v228
    %v233 = vmul.f32 %v231, 1.442695
    %v234 = vpow.pop %v233
    %v235 = vmul.f32 %v232, 1.442695
    %v236 = vpow.pop %v235
    %239 = vset.pattern.permute.xlu0 0
    %240 = vperm.xlu0 %239, %v234
    %v241 = vpop.permute.xlu0 %240
    %242 = vset.pattern.permute.xlu0 0
    %243 = vperm.xlu0 %242, %v236
    %v244 = vpop.permute.xlu0 %243
    %v245 = vlaneseq
    %v246 = vshrl.u32 %v245, 7
    %v247 = vsub.s32 %v204, %v246
    %v248 = vrot.slane %v241, %v247
    %v249 = vlaneseq
    %v250 = vshrl.u32 %v249, 7
    %v251 = vsub.s32 %v204, %v250
    %v252 = vrot.slane %v244, %v251
    %v253 = vsel %vm213, %v252, %v248
    %v255 = vsel %vm216, %v253, 0.0
    %256 = vadd.xlane.f32.xlu0 %v255
    %v257 = vpop.xlane.xlu0 %256
    %v258 = vrcp.pop %v257
    %v260 = vlaneseq
    %v261 = vshrl.u32 %v260, 7
    %v262 = vsub.s32 0, %v261
    %v263 = vrot.slane %v258, %v262
    %v264 = vlaneseq
    %v265 = vshrl.u32 %v264, 7
    %v266 = vsub.s32 1, %v265
    %v267 = vrot.slane %v258, %v266
    %v270 = vmul.f32 %v234, %v263
    %v271 = vmul.f32 %v236, %v267
    %273 = vset.pattern.permute.xlu0 0
    %274 = vperm.xlu0 %273, %v270
    %v275 = vpop.permute.xlu0 %274
    %v276 = vlaneseq
    %v277 = vshrl.u32 %v276, 7
    %v278 = vsub.s32 %v204, %v277
    %v279 = vrot.slane %v275, %v278
    %vm280 = vcmask 64512
    %v281 = vsel %vm280, %v279, 0
    %283 = vmatprep.subr.mxu0 0.0
    %284 = vmatpush1.msra.mxu0 0.0
    %285 = vmatprep.subr.mxu0 0.0
    %286 = vmatpush1.msra.mxu0 0.0
    %287 = vmatprep.subr.mxu0 0.0
    %288 = vmatpush1.msra.mxu0 0.0
    %289 = vmatprep.subr.mxu0 0.0
    %290 = vmatpush1.msra.mxu0 0.0
    %291 = vmatprep.subr.mxu0 0.0
    %292 = vmatpush1.msra.mxu0 0.0
    %293 = vmatprep.subr.mxu0 0.0
    %294 = vmatpush1.msra.mxu0 0.0
    %295 = vmatprep.subr.mxu0 0.0
    %296 = vmatpush1.msra.mxu0 0.0
    %297 = vmatprep.subr.mxu0 0.0
    %298 = vmatpush1.msra.mxu0 0.0
    %299 = vmatprep.subr.mxu0 0.0
    %300 = vmatpush1.msra.mxu0 0.0
    %301 = vmatprep.subr.mxu0 0.0
    %302 = vmatpush1.msra.mxu0 0.0
    %303 = vmatprep.subr.mxu0 0.0
    %304 = vmatpush1.msra.mxu0 0.0
    %305 = vmatprep.subr.mxu0 0.0
    %306 = vmatpush1.msra.mxu0 0.0
    %307 = vmatprep.subr.mxu0 0.0
    %308 = vmatpush1.msra.mxu0 0.0
    %309 = vmatprep.subr.mxu0 0.0
    %310 = vmatpush1.msra.mxu0 0.0
    %311 = vmatprep.subr.mxu0 0.0
    %312 = vmatpush1.msra.mxu0 0.0
    %313 = vmatprep.subr.mxu0 0.0
    %314 = vmatpush1.msra.mxu0 %v60
    %315 = vmatprep.subr.mxu0 0.0
    %316 = vmatpush2.msra.mxu0 0.0
    %317 = vmatprep.subr.mxu0 0.0
    %318 = vmatpush2.msra.mxu0 0.0
    %319 = vmatprep.subr.mxu0 0.0
    %320 = vmatpush2.msra.mxu0 0.0
    %321 = vmatprep.subr.mxu0 0.0
    %322 = vmatpush2.msra.mxu0 0.0
    %323 = vmatprep.subr.mxu0 0.0
    %324 = vmatpush2.msra.mxu0 0.0
    %325 = vmatprep.subr.mxu0 0.0
    %326 = vmatpush2.msra.mxu0 0.0
    %327 = vmatprep.subr.mxu0 0.0
    %328 = vmatpush2.msra.mxu0 0.0
    %329 = vmatprep.subr.mxu0 0.0
    %330 = vmatpush2.msra.mxu0 0.0
    %331 = vmatprep.subr.mxu0 0.0
    %332 = vmatpush2.msra.mxu0 0.0
    %333 = vmatprep.subr.mxu0 0.0
    %334 = vmatpush2.msra.mxu0 0.0
    %335 = vmatprep.subr.mxu0 0.0
    %336 = vmatpush2.msra.mxu0 0.0
    %337 = vmatprep.subr.mxu0 0.0
    %338 = vmatpush2.msra.mxu0 0.0
    %339 = vmatprep.subr.mxu0 0.0
    %340 = vmatpush2.msra.mxu0 0.0
    %341 = vmatprep.subr.mxu0 0.0
    %342 = vmatpush2.msra.mxu0 0.0
    %343 = vmatprep.subr.mxu0 0.0
    %344 = vmatpush2.msra.mxu0 0.0
    %345 = vmatprep.subr.mxu0 0.0
    %346 = vmatpush2.msra.mxu0 0.0
    %347 = vmatprep.mubr.f32.mxu0 0.0
    %348 = vmatmul.mubr.f32.gmra.mxu0 %v281
    %v349 = vpop.f32.mrf.mxu0
    %v350 = vadd.f32 0.0, %v349
    %v351 = vpop.f32.mrf.mxu0
    %352 = vdwg.mxu0
    %354 = vset.pattern.permute.xlu0 0
    %355 = vperm.xlu0 %354, %v271
    %v356 = vpop.permute.xlu0 %355
    %v357 = vlaneseq
    %v358 = vshrl.u32 %v357, 7
    %v359 = vsub.s32 %v204, %v358
    %v360 = vrot.slane %v356, %v359
    %v361 = vsel %vm280, %v360, 0
    %363 = vmatprep.subr.mxu0 0.0
    %364 = vmatpush1.msra.mxu0 0.0
    %365 = vmatprep.subr.mxu0 0.0
    %366 = vmatpush1.msra.mxu0 0.0
    %367 = vmatprep.subr.mxu0 0.0
    %368 = vmatpush1.msra.mxu0 0.0
    %369 = vmatprep.subr.mxu0 0.0
    %370 = vmatpush1.msra.mxu0 0.0
    %371 = vmatprep.subr.mxu0 0.0
    %372 = vmatpush1.msra.mxu0 0.0
    %373 = vmatprep.subr.mxu0 0.0
    %374 = vmatpush1.msra.mxu0 0.0
    %375 = vmatprep.subr.mxu0 0.0
    %376 = vmatpush1.msra.mxu0 0.0
    %377 = vmatprep.subr.mxu0 0.0
    %378 = vmatpush1.msra.mxu0 0.0
    %379 = vmatprep.subr.mxu0 0.0
    %380 = vmatpush1.msra.mxu0 0.0
    %381 = vmatprep.subr.mxu0 0.0
    %382 = vmatpush1.msra.mxu0 0.0
    %383 = vmatprep.subr.mxu0 0.0
    %384 = vmatpush1.msra.mxu0 0.0
    %385 = vmatprep.subr.mxu0 0.0
    %386 = vmatpush1.msra.mxu0 0.0
    %387 = vmatprep.subr.mxu0 0.0
    %388 = vmatpush1.msra.mxu0 0.0
    %389 = vmatprep.subr.mxu0 0.0
    %390 = vmatpush1.msra.mxu0 0.0
    %391 = vmatprep.subr.mxu0 0.0
    %392 = vmatpush1.msra.mxu0 0.0
    %393 = vmatprep.subr.mxu0 0.0
    %394 = vmatpush1.msra.mxu0 %v61
    %395 = vmatprep.subr.mxu0 0.0
    %396 = vmatpush2.msra.mxu0 0.0
    %397 = vmatprep.subr.mxu0 0.0
    %398 = vmatpush2.msra.mxu0 0.0
    %399 = vmatprep.subr.mxu0 0.0
    %400 = vmatpush2.msra.mxu0 0.0
    %401 = vmatprep.subr.mxu0 0.0
    %402 = vmatpush2.msra.mxu0 0.0
    %403 = vmatprep.subr.mxu0 0.0
    %404 = vmatpush2.msra.mxu0 0.0
    %405 = vmatprep.subr.mxu0 0.0
    %406 = vmatpush2.msra.mxu0 0.0
    %407 = vmatprep.subr.mxu0 0.0
    %408 = vmatpush2.msra.mxu0 0.0
    %409 = vmatprep.subr.mxu0 0.0
    %410 = vmatpush2.msra.mxu0 0.0
    %411 = vmatprep.subr.mxu0 0.0
    %412 = vmatpush2.msra.mxu0 0.0
    %413 = vmatprep.subr.mxu0 0.0
    %414 = vmatpush2.msra.mxu0 0.0
    %415 = vmatprep.subr.mxu0 0.0
    %416 = vmatpush2.msra.mxu0 0.0
    %417 = vmatprep.subr.mxu0 0.0
    %418 = vmatpush2.msra.mxu0 0.0
    %419 = vmatprep.subr.mxu0 0.0
    %420 = vmatpush2.msra.mxu0 0.0
    %421 = vmatprep.subr.mxu0 0.0
    %422 = vmatpush2.msra.mxu0 0.0
    %423 = vmatprep.subr.mxu0 0.0
    %424 = vmatpush2.msra.mxu0 0.0
    %425 = vmatprep.subr.mxu0 0.0
    %426 = vmatpush2.msra.mxu0 0.0
    %427 = vmatprep.mubr.f32.mxu0 0.0
    %428 = vmatmul.mubr.f32.gmra.mxu0 %v361
    %v429 = vpop.f32.mrf.mxu0
    %v430 = vadd.f32 0.0, %v429
    %v431 = vpop.f32.mrf.mxu0
    %432 = vdwg.mxu0
    %v435 = vrot.slane %v430, 7
    %v436 = vsel %vm213, %v435, %v350
    %vm438 = vcmask 254976
    %439 = vst.msk [vmem:[#allocation8] sm:$0x3] %vm438, %v436
    %v440 = vsel %vm213, %v360, %v279
    %442 = vst.msk [vmem:[#allocation9] sm:$0x3] %vm216, %v440
    // Predicated region
    $region30: #{tpu_custom_call.1} parent=1 // pred_check
      _
    $region31: #{tpu_custom_call.1} parent=1 // pred_check_branch
      %444 = sbr.rel (0) target = $region33
    $region32: #{tpu_custom_call.1} parent=1 // pred_region
      %s446 = ssub.s32 32, 32
      %447 = vsyncadd [#allocation4], %s446
      %s449 = sshll.u32 [#allocation8], 4
      %s450 = int_to_ptr.vmem [resolvable:$true] %s449
      %452 = dma.vmem_to_hbm [thread:$0]  %s450, 32, %s4, [#allocation4]
    $region33: #{tpu_custom_call.1} parent=1 // pred_fallthru
      _
    // Predicated region
    $region34: #{tpu_custom_call.1} parent=1 // pred_check
      _
    $region35: #{tpu_custom_call.1} parent=1 // pred_check_branch
      %454 = sbr.rel (0) target = $region37
    $region36: #{tpu_custom_call.1} parent=1 // pred_region
      %s456 = ssub.s32 32, 32
      %457 = vsyncadd [#allocation10], %s456
      %s459 = sshll.u32 [#allocation9], 4
      %s460 = int_to_ptr.vmem [resolvable:$true] %s459
      %462 = dma.vmem_to_hbm [thread:$0]  %s460, 32, %s5, [#allocation10]
    $region37: #{tpu_custom_call.1} parent=1 // pred_fallthru
      _
    // Predicated region
    $region38: #{tpu_custom_call.1} parent=1 // pred_check
      _
    $region39: #{tpu_custom_call.1} parent=1 // pred_check_branch
      %464 = sbr.rel (0) target = $region41
    $region40: #{tpu_custom_call.1} parent=1 // pred_region
      %465 = dma.done [#allocation4], 32
    $region41: #{tpu_custom_call.1} parent=1 // pred_fallthru
      _
    // Predicated region
    $region42: #{tpu_custom_call.1} parent=1 // pred_check
      _
    $region43: #{tpu_custom_call.1} parent=1 // pred_check_branch
      %467 = sbr.rel (0) target = $region45
    $region44: #{tpu_custom_call.1} parent=1 // pred_region
      %468 = dma.done [#allocation10], 32
    $region45: #{tpu_custom_call.1} parent=1 // pred_fallthru
      _
    %469 = vsyncpa [#allocation3], 1
    %470 = vsyncpa [#allocation6], 1
    %471 = vsyncpa [#allocation4], 1
    %472 = vsyncpa [#allocation10], 1

// kernel: tpu_custom_call.1
$region0: #{tpu_custom_call.1}
  #allocation0 [shape = 'u32[]', space=smem, size = 0x4, offset = 0x4, fixed_abs, tag = 'smem constant byte address 0x4 - core index']
  #allocation1 [shape = 'u32[144,128]{1,0:T(1,128)}', space=vmem, size = 0x12000, scoped, tag = 'internal scratch']
  %s0 = inlined_call_operand.hbm [shape: f32[2,8,32], index: 0, kind: input, shape index: {}]
  %s1 = inlined_call_operand.hbm [shape: f32[2,32], index: 1, kind: input, shape index: {}]
  %s2 = inlined_call_operand.hbm [shape: f32[32,32], index: 2, kind: input, shape index: {}]
  %s3 = inlined_call_operand.vmem [shape: f32[1,32], index: 3, kind: input, shape index: {}]
  %s4 = inlined_call_operand.hbm [shape: f32[2,32], index: 4, kind: output, shape index: {0}]
  %s5 = inlined_call_operand.hbm [shape: f32[2,8], index: 5, kind: output, shape index: {1}]
  %6 = xla_tuple %s4, %s5
  %s7 = sld [smem:[#allocation0]]
  $region46: #{tpu_custom_call.1} parent=0
    _
  %s9 = ssub.s32 1, %s7
  %s10 = scalar_select 0, %s9, %s7
  $region1: #{tpu_custom_call.1} parent=0
    #allocation2 [shape = 'u8[8192]{0}', space=vmem, size = 0x2000, scoped, tag = 'input window, operand 0, single buffered']
    #allocation3 [shape = 's32[1]{0}', space=sflag, size = 0x4, scoped, tag = 'scoped memory for tpu_custom_call.1']
    #allocation4 [shape = 's32[1]{0}', space=sflag, size = 0x4, scoped, tag = 'scoped memory for tpu_custom_call.1']
    #allocation5 [shape = 'u8[1024]{0}', space=vmem, size = 0x400, scoped, tag = 'input window, operand 1, single buffered']
    #allocation6 [shape = 's32[1]{0}', space=sflag, size = 0x4, scoped, tag = 'scoped memory for tpu_custom_call.1']
    #allocation7 [shape = 'u8[16384]{0}', space=vmem, size = 0x4000, scoped, tag = 'input window, operand 2, single buffered']
    #allocation8 [shape = 'u8[1024]{0}', space=vmem, size = 0x400, scoped, tag = 'output window, operand 0, single buffered']
    #allocation9 [shape = 'u8[1024]{0}', space=vmem, size = 0x400, scoped, tag = 'output window, operand 1, single buffered']
    #allocation10 [shape = 's32[1]{0}', space=sflag, size = 0x4, scoped, tag = 'scoped memory for tpu_custom_call.1']
    %11 = vsyncpa [#allocation3], 0
    %12 = vsyncpa [#allocation6], 0
    %13 = vsyncpa [#allocation4], 0
    %14 = vsyncpa [#allocation10], 0
    // Predicated region
    $region2: #{tpu_custom_call.1} parent=1 // pred_check
      _
    $region3: #{tpu_custom_call.1} parent=1 // pred_check_branch
      %16 = sbr.rel (0) target = $region5
    $region4: #{tpu_custom_call.1} parent=1 // pred_region
      %s18 = ssub.s32 256, 256
      %19 = vsyncadd [#allocation3], %s18
      %s20 = sshll.u32 [#allocation2], 4
      %s21 = int_to_ptr.vmem [resolvable:$true] %s20
      %26 = dma.hbm_to_vmem [thread:$0]  %s0, 256, %s21, [#allocation3], 128, 128, 8
    $region5: #{tpu_custom_call.1} parent=1 // pred_fallthru
      _
    // Predicated region
    $region6: #{tpu_custom_call.1} parent=1 // pred_check
      _
    $region7: #{tpu_custom_call.1} parent=1 // pred_check_branch
      %28 = sbr.rel (0) target = $region9
    $region8: #{tpu_custom_call.1} parent=1 // pred_region
      %s30 = ssub.s32 32, 32
      %31 = vsyncadd [#allocation6], %s30
      %s33 = sshll.u32 [#allocation5], 4
      %s34 = int_to_ptr.vmem [resolvable:$true] %s33
      %36 = dma.hbm_to_vmem [thread:$0]  %s1, 32, %s34, [#allocation6]
    $region9: #{tpu_custom_call.1} parent=1 // pred_fallthru
      _
    // Predicated region
    $region10: #{tpu_custom_call.1} parent=1 // pred_check
      _
    $region11: #{tpu_custom_call.1} parent=1 // pred_check_branch
      %38 = sbr.rel (0) target = $region13
    $region12: #{tpu_custom_call.1} parent=1 // pred_region
      %s40 = ssub.s32 512, 512
      %41 = vsyncadd [#allocation6], %s40
      %s42 = sshll.u32 [#allocation7], 4
      %s43 = int_to_ptr.vmem [resolvable:$true] %s42
      %48 = dma.hbm_to_vmem [thread:$0]  %s2, 512, %s43, [#allocation6], 128, 128, 8
    $region13: #{tpu_custom_call.1} parent=1 // pred_fallthru
      _
    // Predicated region
    $region14: #{tpu_custom_call.1} parent=1 // pred_check
      _
    $region15: #{tpu_custom_call.1} parent=1 // pred_check_branch
      %50 = sbr.rel (0) target = $region17
    $region16: #{tpu_custom_call.1} parent=1 // pred_region
      _
    $region17: #{tpu_custom_call.1} parent=1 // pred_fallthru
      _
    // Predicated region
    $region18: #{tpu_custom_call.1} parent=1 // pred_check
      _
    $region19: #{tpu_custom_call.1} parent=1 // pred_check_branch
      %52 = sbr.rel (0) target = $region21
    $region20: #{tpu_custom_call.1} parent=1 // pred_region
      %53 = dma.done [#allocation3], 256
    $region21: #{tpu_custom_call.1} parent=1 // pred_fallthru
      _
    // Predicated region
    $region22: #{tpu_custom_call.1} parent=1 // pred_check
      _
    $region23: #{tpu_custom_call.1} parent=1 // pred_check_branch
      %55 = sbr.rel (0) target = $region25
    $region24: #{tpu_custom_call.1} parent=1 // pred_region
      %56 = dma.done [#allocation6], 32
    $region25: #{tpu_custom_call.1} parent=1 // pred_fallthru
      _
    // Predicated region
    $region26: #{tpu_custom_call.1} parent=1 // pred_check
      _
    $region27: #{tpu_custom_call.1} parent=1 // pred_check_branch
      %58 = sbr.rel (0) target = $region29
    $region28: #{tpu_custom_call.1} parent=1 // pred_region
      %59 = dma.done [#allocation6], 512
    $region29: #{tpu_custom_call.1} parent=1 // pred_fallthru
      _
    %v60 = vld [vmem:[#allocation2] sm:$0xff]
    %v61 = vld [vmem:[#allocation2 + $0x8] sm:$0xff]
    %v62 = vld [vmem:[#allocation7] sm:$0xff]
    %v63 = vld [vmem:[#allocation7 + $0x8] sm:$0xff]
    %v64 = vld [vmem:[#allocation7 + $0x10] sm:$0xff]
    %v65 = vld [vmem:[#allocation7 + $0x18] sm:$0xff]
    %vm66 = vcmask 261120
    %v68 = vsel %vm66, %v60, 0
    %v71 = vsel %vm66, %v61, 0
    %73 = vmatprep.subr.mxu0 0.0
    %74 = vmatpush1.msra.mxu0 0.0
    %75 = vmatprep.subr.mxu0 0.0
    %76 = vmatpush1.msra.mxu0 0.0
    %77 = vmatprep.subr.mxu0 0.0
    %78 = vmatpush1.msra.mxu0 0.0
    %79 = vmatprep.subr.mxu0 0.0
    %80 = vmatpush1.msra.mxu0 0.0
    %81 = vmatprep.subr.mxu0 0.0
    %82 = vmatpush1.msra.mxu0 0.0
    %83 = vmatprep.subr.mxu0 0.0
    %84 = vmatpush1.msra.mxu0 0.0
    %85 = vmatprep.subr.mxu0 0.0
    %86 = vmatpush1.msra.mxu0 0.0
    %87 = vmatprep.subr.mxu0 0.0
    %88 = vmatpush1.msra.mxu0 0.0
    %89 = vmatprep.subr.mxu0 0.0
    %90 = vmatpush1.msra.mxu0 0.0
    %91 = vmatprep.subr.mxu0 0.0
    %92 = vmatpush1.msra.mxu0 0.0
    %93 = vmatprep.subr.mxu0 0.0
    %94 = vmatpush1.msra.mxu0 0.0
    %95 = vmatprep.subr.mxu0 0.0
    %96 = vmatpush1.msra.mxu0 0.0
    %97 = vmatprep.subr.mxu0 0.0
    %98 = vmatpush1.msra.mxu0 %v65
    %99 = vmatprep.subr.mxu0 0.0
    %100 = vmatpush1.msra.mxu0 %v64
    %101 = vmatprep.subr.mxu0 0.0
    %102 = vmatpush1.msra.mxu0 %v63
    %103 = vmatprep.subr.mxu0 0.0
    %104 = vmatpush1.msra.mxu0 %v62
    %105 = vmatprep.subr.mxu0 0.0
    %106 = vmatpush2.msra.mxu0 0.0
    %107 = vmatprep.subr.mxu0 0.0
    %108 = vmatpush2.msra.mxu0 0.0
    %109 = vmatprep.subr.mxu0 0.0
    %110 = vmatpush2.msra.mxu0 0.0
    %111 = vmatprep.subr.mxu0 0.0
    %112 = vmatpush2.msra.mxu0 0.0
    %113 = vmatprep.subr.mxu0 0.0
    %114 = vmatpush2.msra.mxu0 0.0
    %115 = vmatprep.subr.mxu0 0.0
    %116 = vmatpush2.msra.mxu0 0.0
    %117 = vmatprep.subr.mxu0 0.0
    %118 = vmatpush2.msra.mxu0 0.0
    %119 = vmatprep.subr.mxu0 0.0
    %120 = vmatpush2.msra.mxu0 0.0
    %121 = vmatprep.subr.mxu0 0.0
    %122 = vmatpush2.msra.mxu0 0.0
    %123 = vmatprep.subr.mxu0 0.0
    %124 = vmatpush2.msra.mxu0 0.0
    %125 = vmatprep.subr.mxu0 0.0
    %126 = vmatpush2.msra.mxu0 0.0
    %127 = vmatprep.subr.mxu0 0.0
    %128 = vmatpush2.msra.mxu0 0.0
    %129 = vmatprep.subr.mxu0 0.0
    %130 = vmatpush2.msra.mxu0 0.0
    %131 = vmatprep.subr.mxu0 0.0
    %132 = vmatpush2.msra.mxu0 0.0
    %133 = vmatprep.subr.mxu0 0.0
    %134 = vmatpush2.msra.mxu0 0.0
    %135 = vmatprep.subr.mxu0 0.0
    %136 = vmatpush2.msra.mxu0 0.0
    %137 = vmatprep.mubr.f32.mxu0 0.0
    %138 = vmatmul.mubr.f32.gmra.mxu0 %v68
    %v139 = vpop.f32.mrf.mxu0
    %v140 = vadd.f32 0.0, %v139
    %v141 = vpop.f32.mrf.mxu0
    %142 = vmatprep.mubr.f32.mxu0 0.0
    %143 = vmatmul.mubr.f32.gmra.mxu0 %v71
    %v144 = vpop.f32.mrf.mxu0
    %v145 = vadd.f32 0.0, %v144
    %v146 = vpop.f32.mrf.mxu0
    %147 = vdwg.mxu0
    %v148 = vld [vmem:[#allocation5] sm:$0x3]
    %v151 = vunpack.c.l.s4 1966171168
    %v152 = vunpack.c.0.s8 %v151
    %v153 = vlaneseq
    %v154 = vshrl.u32 %v153, 7
    %v155 = vsub.s32 %v152, %v154
    %v156 = vrot.slane %v148, %v155
    %v157 = vcombine.high %v156, %v156
    %v159 = vunpack.c.l.s4 1966171168
    %v160 = vunpack.c.0.s8 %v159
    %v161 = vlaneseq
    %v162 = vshrl.u32 %v161, 7
    %v163 = vsub.s32 %v160, %v162
    %v164 = vrot.slane %v156, %v163
    %v166 = vunpack.c.l.s4 1966171168
    %v167 = vunpack.c.0.s8 %v166
    %v168 = vlaneseq
    %v169 = vshrl.u32 %v168, 7
    %v170 = vsub.s32 %v167, %v169
    %v171 = vrot.slane %v157, %v170
    %v172 = vlaneseq
    %v173 = vshrl.u32 %v172, 7
    %v174 = vsub.s32 0, %v173
    %v175 = vrot.slane %v164, %v174
    %v176 = vlaneseq
    %v177 = vshrl.u32 %v176, 7
    %v178 = vsub.s32 0, %v177
    %v179 = vrot.slane %v171, %v178
    %v182 = vadd.f32 %v140, %v175
    %v183 = vadd.f32 %v145, %v179
    %v184 = vtanh.pop %v182
    %v185 = vtanh.pop %v183
    %v186 = vld [vmem:[%s3] sm:$0x1]
    %v188 = vlaneseq
    %v189 = vshrl.u32 %v188, 7
    %v190 = vsub.s32 0, %v189
    %v191 = vrot.slane %v186, %v190
    %v193 = vmul.f32 %v184, %v191
    %v194 = vmul.f32 %v185, %v191
    %v195 = vsel %vm66, %v193, 0.0
    %196 = vadd.xlane.f32.xlu0 %v195
    %v197 = vpop.xlane.xlu0 %196
    %v198 = vsel %vm66, %v194, 0.0
    %199 = vadd.xlane.f32.xlu0 %v198
    %v200 = vpop.xlane.xlu0 %199
    %v203 = vlaneseq
    %v204 = vand.u32 %v203, 127
    %v205 = vlaneseq
    %v206 = vshrl.u32 %v205, 7
    %v207 = vsub.s32 %v204, %v206
    %v208 = vrot.slane %v197, %v207
    %v209 = vlaneseq
    %v210 = vshrl.u32 %v209, 7
    %v211 = vsub.s32 %v204, %v210
    %v212 = vrot.slane %v200, %v211
    %vm213 = vcmask 1041409
    %v214 = vsel %vm213, %v212, %v208
    %vm216 = vcmask 58368
    %v217 = vsel %vm216, %v214, -inf
    %218 = vmax.xlane.f32.xlu0 %v217
    %v219 = vpop.xlane.xlu0 %218
    %v221 = vlaneseq
    %v222 = vshrl.u32 %v221, 7
    %v223 = vsub.s32 0, %v222
    %v224 = vrot.slane %v219, %v223
    %v225 = vlaneseq
    %v226 = vshrl.u32 %v225, 7
    %v227 = vsub.s32 1, %v226
    %v228 = vrot.slane %v219, %v227
    %v231 = vsub.f32 %v197, %v224
    %v232 = vsub.f32 %v200, %v228
    %v233 = vmul.f32 %v231, 1.442695
    %v234 = vpow.pop %v233
    %v235 = vmul.f32 %v232, 1.442695
    %v236 = vpow.pop %v235
    %239 = vset.pattern.permute.xlu0 0
    %240 = vperm.xlu0 %239, %v234
    %v241 = vpop.permute.xlu0 %240
    %242 = vset.pattern.permute.xlu0 0
    %243 = vperm.xlu0 %242, %v236
    %v244 = vpop.permute.xlu0 %243
    %v245 = vlaneseq
    %v246 = vshrl.u32 %v245, 7
    %v247 = vsub.s32 %v204, %v246
    %v248 = vrot.slane %v241, %v247
    %v249 = vlaneseq
    %v250 = vshrl.u32 %v249, 7
    %v251 = vsub.s32 %v204, %v250
    %v252 = vrot.slane %v244, %v251
    %v253 = vsel %vm213, %v252, %v248
    %v255 = vsel %vm216, %v253, 0.0
    %256 = vadd.xlane.f32.xlu0 %v255
    %v257 = vpop.xlane.xlu0 %256
    %v258 = vrcp.pop %v257
    %v260 = vlaneseq
    %v261 = vshrl.u32 %v260, 7
    %v262 = vsub.s32 0, %v261
    %v263 = vrot.slane %v258, %v262
    %v264 = vlaneseq
    %v265 = vshrl.u32 %v264, 7
    %v266 = vsub.s32 1, %v265
    %v267 = vrot.slane %v258, %v266
    %v270 = vmul.f32 %v234, %v263
    %v271 = vmul.f32 %v236, %v267
    %273 = vset.pattern.permute.xlu0 0
    %274 = vperm.xlu0 %273, %v270
    %v275 = vpop.permute.xlu0 %274
    %v276 = vlaneseq
    %v277 = vshrl.u32 %v276, 7
    %v278 = vsub.s32 %v204, %v277
    %v279 = vrot.slane %v275, %v278
    %vm280 = vcmask 64512
    %v281 = vsel %vm280, %v279, 0
    %283 = vmatprep.subr.mxu0 0.0
    %284 = vmatpush1.msra.mxu0 0.0
    %285 = vmatprep.subr.mxu0 0.0
    %286 = vmatpush1.msra.mxu0 0.0
    %287 = vmatprep.subr.mxu0 0.0
    %288 = vmatpush1.msra.mxu0 0.0
    %289 = vmatprep.subr.mxu0 0.0
    %290 = vmatpush1.msra.mxu0 0.0
    %291 = vmatprep.subr.mxu0 0.0
    %292 = vmatpush1.msra.mxu0 0.0
    %293 = vmatprep.subr.mxu0 0.0
    %294 = vmatpush1.msra.mxu0 0.0
    %295 = vmatprep.subr.mxu0 0.0
    %296 = vmatpush1.msra.mxu0 0.0
    %297 = vmatprep.subr.mxu0 0.0
    %298 = vmatpush1.msra.mxu0 0.0
    %299 = vmatprep.subr.mxu0 0.0
    %300 = vmatpush1.msra.mxu0 0.0
    %301 = vmatprep.subr.mxu0 0.0
    %302 = vmatpush1.msra.mxu0 0.0
    %303 = vmatprep.subr.mxu0 0.0
    %304 = vmatpush1.msra.mxu0 0.0
    %305 = vmatprep.subr.mxu0 0.0
    %306 = vmatpush1.msra.mxu0 0.0
    %307 = vmatprep.subr.mxu0 0.0
    %308 = vmatpush1.msra.mxu0 0.0
    %309 = vmatprep.subr.mxu0 0.0
    %310 = vmatpush1.msra.mxu0 0.0
    %311 = vmatprep.subr.mxu0 0.0
    %312 = vmatpush1.msra.mxu0 0.0
    %313 = vmatprep.subr.mxu0 0.0
    %314 = vmatpush1.msra.mxu0 %v60
    %315 = vmatprep.subr.mxu0 0.0
    %316 = vmatpush2.msra.mxu0 0.0
    %317 = vmatprep.subr.mxu0 0.0
    %318 = vmatpush2.msra.mxu0 0.0
    %319 = vmatprep.subr.mxu0 0.0
    %320 = vmatpush2.msra.mxu0 0.0
    %321 = vmatprep.subr.mxu0 0.0
    %322 = vmatpush2.msra.mxu0 0.0
    %323 = vmatprep.subr.mxu0 0.0
    %324 = vmatpush2.msra.mxu0 0.0
    %325 = vmatprep.subr.mxu0 0.0
    %326 = vmatpush2.msra.mxu0 0.0
    %327 = vmatprep.subr.mxu0 0.0
    %328 = vmatpush2.msra.mxu0 0.0
    %329 = vmatprep.subr.mxu0 0.0
    %330 = vmatpush2.msra.mxu0 0.0
    %331 = vmatprep.subr.mxu0 0.0
    %332 = vmatpush2.msra.mxu0 0.0
    %333 = vmatprep.subr.mxu0 0.0
    %334 = vmatpush2.msra.mxu0 0.0
    %335 = vmatprep.subr.mxu0 0.0
    %336 = vmatpush2.msra.mxu0 0.0
    %337 = vmatprep.subr.mxu0 0.0
    %338 = vmatpush2.msra.mxu0 0.0
    %339 = vmatprep.subr.mxu0 0.0
    %340 = vmatpush2.msra.mxu0 0.0
    %341 = vmatprep.subr.mxu0 0.0
    %342 = vmatpush2.msra.mxu0 0.0
    %343 = vmatprep.subr.mxu0 0.0
    %344 = vmatpush2.msra.mxu0 0.0
    %345 = vmatprep.subr.mxu0 0.0
    %346 = vmatpush2.msra.mxu0 0.0
    %347 = vmatprep.mubr.f32.mxu0 0.0
    %348 = vmatmul.mubr.f32.gmra.mxu0 %v281
    %v349 = vpop.f32.mrf.mxu0
    %v350 = vadd.f32 0.0, %v349
    %v351 = vpop.f32.mrf.mxu0
    %352 = vdwg.mxu0
    %354 = vset.pattern.permute.xlu0 0
    %355 = vperm.xlu0 %354, %v271
    %v356 = vpop.permute.xlu0 %355
    %v357 = vlaneseq
    %v358 = vshrl.u32 %v357, 7
    %v359 = vsub.s32 %v204, %v358
    %v360 = vrot.slane %v356, %v359
    %v361 = vsel %vm280, %v360, 0
    %363 = vmatprep.subr.mxu0 0.0
    %364 = vmatpush1.msra.mxu0 0.0
    %365 = vmatprep.subr.mxu0 0.0
    %366 = vmatpush1.msra.mxu0 0.0
    %367 = vmatprep.subr.mxu0 0.0
    %368 = vmatpush1.msra.mxu0 0.0
    %369 = vmatprep.subr.mxu0 0.0
    %370 = vmatpush1.msra.mxu0 0.0
    %371 = vmatprep.subr.mxu0 0.0
    %372 = vmatpush1.msra.mxu0 0.0
    %373 = vmatprep.subr.mxu0 0.0
    %374 = vmatpush1.msra.mxu0 0.0
    %375 = vmatprep.subr.mxu0 0.0
    %376 = vmatpush1.msra.mxu0 0.0
    %377 = vmatprep.subr.mxu0 0.0
    %378 = vmatpush1.msra.mxu0 0.0
    %379 = vmatprep.subr.mxu0 0.0
    %380 = vmatpush1.msra.mxu0 0.0
    %381 = vmatprep.subr.mxu0 0.0
    %382 = vmatpush1.msra.mxu0 0.0
    %383 = vmatprep.subr.mxu0 0.0
    %384 = vmatpush1.msra.mxu0 0.0
    %385 = vmatprep.subr.mxu0 0.0
    %386 = vmatpush1.msra.mxu0 0.0
    %387 = vmatprep.subr.mxu0 0.0
    %388 = vmatpush1.msra.mxu0 0.0
    %389 = vmatprep.subr.mxu0 0.0
    %390 = vmatpush1.msra.mxu0 0.0
    %391 = vmatprep.subr.mxu0 0.0
    %392 = vmatpush1.msra.mxu0 0.0
    %393 = vmatprep.subr.mxu0 0.0
    %394 = vmatpush1.msra.mxu0 %v61
    %395 = vmatprep.subr.mxu0 0.0
    %396 = vmatpush2.msra.mxu0 0.0
    %397 = vmatprep.subr.mxu0 0.0
    %398 = vmatpush2.msra.mxu0 0.0
    %399 = vmatprep.subr.mxu0 0.0
    %400 = vmatpush2.msra.mxu0 0.0
    %401 = vmatprep.subr.mxu0 0.0
    %402 = vmatpush2.msra.mxu0 0.0
    %403 = vmatprep.subr.mxu0 0.0
    %404 = vmatpush2.msra.mxu0 0.0
    %405 = vmatprep.subr.mxu0 0.0
    %406 = vmatpush2.msra.mxu0 0.0
    %407 = vmatprep.subr.mxu0 0.0
    %408 = vmatpush2.msra.mxu0 0.0
    %409 = vmatprep.subr.mxu0 0.0
    %410 = vmatpush2.msra.mxu0 0.0
    %411 = vmatprep.subr.mxu0 0.0
    %412 = vmatpush2.msra.mxu0 0.0
    %413 = vmatprep.subr.mxu0 0.0
    %414 = vmatpush2.msra.mxu0 0.0
    %415 = vmatprep.subr.mxu0 0.0
    %416 = vmatpush2.msra.mxu0 0.0
    %417 = vmatprep.subr.mxu0 0.0
    %418 = vmatpush2.msra.mxu0 0.0
    %419 = vmatprep.subr.mxu0 0.0
    %420 = vmatpush2.msra.mxu0 0.0
    %421 = vmatprep.subr.mxu0 0.0
    %422 = vmatpush2.msra.mxu0 0.0
    %423 = vmatprep.subr.mxu0 0.0
    %424 = vmatpush2.msra.mxu0 0.0
    %425 = vmatprep.subr.mxu0 0.0
    %426 = vmatpush2.msra.mxu0 0.0
    %427 = vmatprep.mubr.f32.mxu0 0.0
    %428 = vmatmul.mubr.f32.gmra.mxu0 %v361
    %v429 = vpop.f32.mrf.mxu0
    %v430 = vadd.f32 0.0, %v429
    %v431 = vpop.f32.mrf.mxu0
    %432 = vdwg.mxu0
    %v435 = vrot.slane %v430, 7
    %v436 = vsel %vm213, %v435, %v350
    %vm438 = vcmask 254976
    %439 = vst.msk [vmem:[#allocation8] sm:$0x3] %vm438, %v436
    %v440 = vsel %vm213, %v360, %v279
    %442 = vst.msk [vmem:[#allocation9] sm:$0x3] %vm216, %v440
    // Predicated region
    $region30: #{tpu_custom_call.1} parent=1 // pred_check
      _
    $region31: #{tpu_custom_call.1} parent=1 // pred_check_branch
      %444 = sbr.rel (0) target = $region33
    $region32: #{tpu_custom_call.1} parent=1 // pred_region
      %s446 = ssub.s32 32, 32
      %447 = vsyncadd [#allocation4], %s446
      %s449 = sshll.u32 [#allocation8], 4
      %s450 = int_to_ptr.vmem [resolvable:$true] %s449
      %452 = dma.vmem_to_hbm [thread:$0]  %s450, 32, %s4, [#allocation4]
    $region33: #{tpu_custom_call.1} parent=1 // pred_fallthru
      _
    // Predicated region
    $region34: #{tpu_custom_call.1} parent=1 // pred_check
      _
    $region35: #{tpu_custom_call.1} parent=1 // pred_check_branch
      %454 = sbr.rel (0) target = $region37
    $region36: #{tpu_custom_call.1} parent=1 // pred_region
      %s456 = ssub.s32 32, 32
      %457 = vsyncadd [#allocation10], %s456
      %s459 = sshll.u32 [#allocation9], 4
      %s460 = int_to_ptr.vmem [resolvable:$true] %s459
      %462 = dma.vmem_to_hbm [thread:$0]  %s460, 32, %s5, [#allocation10]
    $region37: #{tpu_custom_call.1} parent=1 // pred_fallthru
      _
    // Predicated region
    $region38: #{tpu_custom_call.1} parent=1 // pred_check
      _
    $region39: #{tpu_custom_call.1} parent=1 // pred_check_branch
      %464 = sbr.rel (0) target = $region41
    $region40: #{tpu_custom_call.1} parent=1 // pred_region
      %465 = dma.done [#allocation4], 32
    $region41: #{tpu_custom_call.1} parent=1 // pred_fallthru
      _
    // Predicated region
    $region42: #{tpu_custom_call.1} parent=1 // pred_check
      _
    $region43: #{tpu_custom_call.1} parent=1 // pred_check_branch
      %467 = sbr.rel (0) target = $region45
    $region44: #{tpu_custom_call.1} parent=1 // pred_region
      %468 = dma.done [#allocation10], 32
    $region45: #{tpu_custom_call.1} parent=1 // pred_fallthru
      _
    %469 = vsyncpa [#allocation3], 1
    %470 = vsyncpa [#allocation6], 1
    %471 = vsyncpa [#allocation4], 1
    %472 = vsyncpa [#allocation10], 1

</llo_original>
